<compile_context>
chip_gen: v7x
topology: tpu7x:2x2x1
jax: 0.10.0
libtpu: 0.0.40
codegen_flags: <defaults>
</compile_context>

<pallas_src>
import functools

import jax
import jax.numpy as jnp
from jax.experimental import pallas as pl
from jax.experimental.pallas import tpu as pltpu


def _round_up(x, m):
    return (x + m - 1) // m * m


def _cdiv(a, b):
    return -(-a // b)


def _pick_th(h_pad, cap):
    """Largest MXU-friendly divisor of h_pad that fits the cap (h_pad if it fits)."""
    if h_pad <= cap:
        return h_pad
    for step in (256, 128):          # prefer 256-wide (v6e/v7x MXU), fall back to 128 (v5e)
        for th in range(cap - cap % step, 0, -step):
            if h_pad % th == 0:
                return th
    return h_pad


def _mlp_kernel(x_ref, w1_ref, b1_ref, w2_ref, b2_ref, o_ref):
    k = pl.program_id(1)

    @pl.when(k == 0)
    def _():
        o_ref[...] = jnp.zeros_like(o_ref)

    # fc1 for this hidden slice: [tm, Din] @ [Din, th] on the MXU, f32 accumulate.
    # x already arrives in the MXU operand dtype (cast once in the wrapper), and the
    # weights arrive pre-transposed, so no in-kernel cast / transpose.
    h = jnp.dot(x_ref[...], w1_ref[...], preferred_element_type=jnp.float32)
    h = jnp.maximum(h + b1_ref[...], 0.0)          # bias add + ReLU in f32

    # fc2 partial product for this hidden slice, accumulated directly into the f32
    # output block (its index map is k-invariant, so it stays resident in VMEM).
    o_ref[...] += jnp.dot(h.astype(w2_ref.dtype), w2_ref[...],
                          preferred_element_type=jnp.float32)

    @pl.when(k == pl.num_programs(1) - 1)
    def _():
        o_ref[...] += b2_ref[...]


def prepare_simple_mlp_weights(w1, b1, w2, b2, *, weight_dtype=None):
    """One-time weight preprocessing: transpose to [Din,H]/[H,Dout], cast, zero-pad.

    Call once (outside the per-step forward) and reuse the returned tuple for every
    simple_mlp_forward call.  Zero padding of the hidden columns keeps them exactly
    zero through bias+ReLU, so padded dims never contribute to the output.
    """
    hidden, dim_input = w1.shape
    dim_output = w2.shape[0]
    f32 = jnp.float32
    wdt = w1.dtype if weight_dtype is None else weight_dtype

    din_pad = _round_up(dim_input, 128)
    h_pad = _round_up(hidden, 128)
    dout_pad = _round_up(dim_output, 128)

    w1_p = jnp.zeros((din_pad, h_pad), wdt).at[:dim_input, :hidden].set(w1.T.astype(wdt))
    b1_p = jnp.zeros((1, h_pad), f32).at[0, :hidden].set(b1.astype(f32))
    w2_p = jnp.zeros((h_pad, dout_pad), wdt).at[:hidden, :dim_output].set(w2.T.astype(wdt))
    b2_p = jnp.zeros((1, dout_pad), f32).at[0, :dim_output].set(b2.astype(f32))
    return w1_p, b1_p, w2_p, b2_p


def simple_mlp_forward(x, w1_p, b1_p, w2_p, b2_p, *, dim_output,
                       max_batch_tile=256, min_batch_tiles=1, th_cap=1024):
    """Fused SimpleMLP forward on pre-prepared (transposed/padded) weights.

    x:    [B, Din] f32
    w1_p: [din_pad, h_pad], b1_p: [1, h_pad]
    w2_p: [h_pad, dout_pad], b2_p: [1, dout_pad]
    Returns [B, dim_output], squeezed on dim 0 iff B == 1 (torch .squeeze(dim=0)).
    """
    batch, dim_input = x.shape
    din_pad, h_pad = w1_p.shape
    dout_pad = w2_p.shape[1]
    wdt = w1_p.dtype

    # x compute dtype: match sub-f32 weights (halves x DMA; bf16 MXU operand).
    x_dtype = jnp.bfloat16 if wdt == jnp.bfloat16 else x.dtype

    # --- batch tile plan: no over-padding beyond n_bt * tm (tm multiple of 8). ---
    b_pad8 = _round_up(max(batch, 1), 8)
    n_bt = max(min_batch_tiles, _cdiv(b_pad8, max_batch_tile))
    tm = _round_up(_cdiv(b_pad8, n_bt), 8)
    b_pad = n_bt * tm

    # --- hidden (reduction) tile: divisor of h_pad, lane/MXU friendly. ---
    th = _pick_th(h_pad, th_cap)
    k_steps = h_pad // th

    x_p = jnp.zeros((b_pad, din_pad), x_dtype).at[:batch, :dim_input].set(
        x.astype(x_dtype))

    # Weight slice specs; deepen the pipeline when the per-step MXU work is short
    # relative to the weight DMA (only meaningful with >= 3 reduction steps).
    if k_steps >= 3:
        w1_spec = pl.BlockSpec((din_pad, th), lambda i, k: (0, k),
                               pipeline_mode=pl.Buffered(3))
        w2_spec = pl.BlockSpec((th, dout_pad), lambda i, k: (k, 0),
                               pipeline_mode=pl.Buffered(3))
        n_wbuf = 3
    else:
        w1_spec = pl.BlockSpec((din_pad, th), lambda i, k: (0, k))
        w2_spec = pl.BlockSpec((th, dout_pad), lambda i, k: (k, 0))
        n_wbuf = 2

    wsize = jnp.dtype(wdt).itemsize
    xsize = jnp.dtype(x_dtype).itemsize
    footprint = (2 * tm * din_pad * xsize            # x tile, double buffered
                 + n_wbuf * din_pad * th * wsize     # w1 slice
                 + 2 * th * 4                        # b1 slice
                 + n_wbuf * th * dout_pad * wsize    # w2 slice
                 + 2 * dout_pad * 4                  # b2
                 + 2 * tm * dout_pad * 4)            # output block (f32)
    vmem_limit = int(min(32 << 20, max(16 << 20, 2 * footprint)))

    cost = pl.CostEstimate(
        flops=2 * b_pad * din_pad * h_pad + 2 * b_pad * h_pad * dout_pad,
        transcendentals=0,
        bytes_accessed=(x_p.size * xsize
                        + w1_p.size * wsize + b1_p.size * 4
                        + w2_p.size * wsize + b2_p.size * 4
                        + b_pad * dout_pad * 4),
    )

    out_p = pl.pallas_call(
        _mlp_kernel,
        out_shape=jax.ShapeDtypeStruct((b_pad, dout_pad), jnp.float32),
        grid=(n_bt, k_steps),                              # (batch: parallel, hidden: arbitrary)
        in_specs=[
            pl.BlockSpec((tm, din_pad), lambda i, k: (i, 0)),   # x tile (k-invariant)
            w1_spec,                                            # fc1 weight slice
            pl.BlockSpec((1, th), lambda i, k: (0, k)),         # fc1 bias slice
            w2_spec,                                            # fc2 weight slice
            pl.BlockSpec((1, dout_pad), lambda i, k: (0, 0)),   # fc2 bias (grid-invariant)
        ],
        out_specs=pl.BlockSpec((tm, dout_pad), lambda i, k: (i, 0)),
        compiler_params=pltpu.CompilerParams(
            dimension_semantics=("parallel", "arbitrary"),
            vmem_limit_bytes=vmem_limit),
        cost_estimate=cost,
    )(x_p, w1_p, b1_p, w2_p, b2_p)

    out = out_p[:batch, :dim_output].astype(x.dtype)
    # torch's .squeeze(dim=0): only drops the leading axis if it is size 1.
    if out.shape[0] == 1:
        out = out.reshape(out.shape[1:])
    return out


def init_simple_mlp_params(key, dim_input, dim_output, dtype=jnp.float32):
    """Mirrors the PyTorch module: xavier_normal_ weights, default uniform biases."""
    hidden = dim_input // 2
    k1, k2, k3, k4 = jax.random.split(key, 4)

    def xavier_normal(k, out_f, in_f):
        std = (2.0 / (in_f + out_f)) ** 0.5
        return (jax.random.normal(k, (out_f, in_f)) * std).astype(dtype)

    def bias_uniform(k, out_f, in_f):
        bound = 1.0 / (in_f ** 0.5)
        return jax.random.uniform(k, (out_f,), minval=-bound, maxval=bound).astype(dtype)

    w1 = xavier_normal(k1, hidden, dim_input)
    b1 = bias_uniform(k2, hidden, dim_input)
    w2 = xavier_normal(k3, dim_output, hidden)
    b2 = bias_uniform(k4, dim_output, hidden)
    return w1, b1, w2, b2


def reference_forward(x, w1, b1, w2, b2):
    h = jnp.maximum(x @ w1.T + b1, 0.0)
    out = h @ w2.T + b2
    if out.shape[0] == 1:
        out = out.reshape(out.shape[1:])
    return out


def reference_forward_bf16w(x, w1, b1, w2, b2):
    """Reference mirroring the kernel's bf16 x/weight quantization (f32 accumulate)."""
    f32 = jnp.float32
    deq = lambda a: a.astype(jnp.bfloat16).astype(f32)
    h = jnp.maximum(deq(x) @ deq(w1).T + b1, 0.0)
    out = deq(h) @ deq(w2).T + b2
    if out.shape[0] == 1:
        out = out.reshape(out.shape[1:])
    return out


if __name__ == "__main__":
    key = jax.random.PRNGKey(0)
    k1, k2, k3, k4, k5, k6 = jax.random.split(key, 6)

    # --- case 1: tiny spec-sized shapes, f32 weights, single-tile grid -------------
    batch, din, dout = 2, 32, 8
    w1, b1, w2, b2 = init_simple_mlp_params(k1, din, dout)
    x = jax.random.normal(k2, (batch, din), dtype=jnp.float32)
    prep = prepare_simple_mlp_weights(w1, b1, w2, b2)               # hoisted, once
    fwd = jax.jit(functools.partial(simple_mlp_forward, dim_output=dout))
    out = jax.block_until_ready(fwd(x, *prep))
    ref = reference_forward(x, w1, b1, w2, b2)
    assert out.shape == (batch, dout), out.shape
    assert jnp.allclose(out, ref, atol=1e-5, rtol=1e-5), "case1 f32 mismatch vs reference"

    # --- case 2: review shapes B=300, Din=1280 (H=640): 2x152 batch tiles, single
    #     640-wide hidden step (no padding waste), bf16 weights + bf16 x ------------
    b2_, din2, dout2 = 300, 1280, 64
    w1b, b1b, w2b, b2b = init_simple_mlp_params(k3, din2, dout2)
    x2 = jax.random.normal(k4, (b2_, din2), dtype=jnp.float32)
    prep2 = prepare_simple_mlp_weights(w1b, b1b, w2b, b2b, weight_dtype=jnp.bfloat16)
    fwd2 = jax.jit(functools.partial(simple_mlp_forward, dim_output=dout2))
    out2 = jax.block_until_ready(fwd2(x2, *prep2))
    ref2 = reference_forward_bf16w(x2, w1b, b1b, w2b, b2b)
    assert out2.shape == (b2_, dout2), out2.shape
    assert jnp.allclose(out2, ref2, atol=1e-2, rtol=1e-2), "case2 bf16 mismatch vs reference"

    # --- case 3: larger hidden (H=1280): multi-step reduction axis (5 x 256) with the
    #     output-block accumulator and Buffered(3) weight pipeline, bf16 ------------
    b3_, din3, dout3 = 300, 2560, 64
    w1c, b1c, w2c, b2c = init_simple_mlp_params(k5, din3, dout3)
    x3 = jax.random.normal(k6, (b3_, din3), dtype=jnp.float32)
    prep3 = prepare_simple_mlp_weights(w1c, b1c, w2c, b2c, weight_dtype=jnp.bfloat16)
    fwd3 = jax.jit(functools.partial(simple_mlp_forward, dim_output=dout3))
    out3 = jax.block_until_ready(fwd3(x3, *prep3))
    ref3 = reference_forward_bf16w(x3, w1c, b1c, w2c, b2c)
    assert out3.shape == (b3_, dout3), out3.shape
    assert jnp.allclose(out3, ref3, atol=1e-2, rtol=1e-2), "case3 bf16 mismatch vs reference"

    print("KERNEL_OK")
</pallas_src>

<mosaic_0001>
module attributes {stable_mosaic.version = 11 : i64} {
  func.func @_mlp_kernel(%arg0: i32, %arg1: i32, %arg2: memref<8x128xf32, #tpu.memory_space<vmem>>, %arg3: memref<128x128xf32, #tpu.memory_space<vmem>>, %arg4: memref<1x128xf32, #tpu.memory_space<vmem>>, %arg5: memref<128x128xf32, #tpu.memory_space<vmem>>, %arg6: memref<1x128xf32, #tpu.memory_space<vmem>>, %arg7: memref<8x128xf32, #tpu.memory_space<vmem>>) attributes {dimension_semantics = [#tpu.dimension_semantics<parallel>, #tpu.dimension_semantics<arbitrary>], iteration_bounds = array<i64: 1, 1>, scalar_prefetch = 0 : i64, scratch_operands = 0 : i64, tpu.core_type = #tpu.core_type<tc>, window_params = [{transform_indices = @transform_0, window_bounds = array<i64: 8, 128>}, {transform_indices = @transform_1, window_bounds = array<i64: 128, 128>}, {transform_indices = @transform_2, window_bounds = array<i64: 1, 128>}, {transform_indices = @transform_3, window_bounds = array<i64: 128, 128>}, {pipeline_mode = #tpu.pipeline_mode<synchronous>, transform_indices = @transform_4, window_bounds = array<i64: 1, 128>}, {transform_indices = @transform_5, window_bounds = array<i64: 8, 128>}]} {
    %c0_i32 = arith.constant 0 : i32
    %0 = arith.cmpi eq, %arg1, %c0_i32 : i32
    %1 = arith.extui %0 : i1 to i32
    %c0_i32_0 = arith.constant 0 : i32
    %2 = arith.cmpi ne, %1, %c0_i32_0 : i32
    scf.if %2 {
      %cst_16 = arith.constant 0.000000e+00 : f32
      %19 = vector.broadcast %cst_16 : f32 to vector<8x128xf32>
      %c0_17 = arith.constant 0 : index
      %c0_18 = arith.constant 0 : index
      %20 = vector.load %arg7[%c0_17, %c0_18] : memref<8x128xf32, #tpu.memory_space<vmem>>, vector<8x128xf32>
      tpu.vector_store %arg7[%c0_17, %c0_18], %19 {strides = array<i32>} : memref<8x128xf32, #tpu.memory_space<vmem>>, vector<8x128xf32>,
    } else {
    }
    %c0 = arith.constant 0 : index
    %c0_1 = arith.constant 0 : index
    %3 = vector.load %arg2[%c0, %c0_1] : memref<8x128xf32, #tpu.memory_space<vmem>>, vector<8x128xf32>
    %c0_2 = arith.constant 0 : index
    %c0_3 = arith.constant 0 : index
    %4 = vector.load %arg3[%c0_2, %c0_3] : memref<128x128xf32, #tpu.memory_space<vmem>>, vector<128x128xf32>
    %cst = arith.constant dense<0.000000e+00> : vector<8x128xf32>
    %5 = tpu.matmul %3, %4, %cst {dimension_numbers = #tpu.dot_dimension_numbers<[1], [0], [0], [1], [0, 0, 1, 1], [], []>} : vector<8x128xf32>, vector<128x128xf32>, vector<8x128xf32> -> vector<8x128xf32>
    %c0_4 = arith.constant 0 : index
    %c0_5 = arith.constant 0 : index
    %6 = vector.load %arg4[%c0_4, %c0_5] : memref<1x128xf32, #tpu.memory_space<vmem>>, vector<1x128xf32>
    %7 = vector.broadcast %6 : vector<1x128xf32> to vector<8x128xf32>
    %8 = arith.addf %5, %7 : vector<8x128xf32>
    %cst_6 = arith.constant 0.000000e+00 : f32
    %9 = vector.broadcast %cst_6 : f32 to vector<8x128xf32>
    %10 = arith.maximumf %8, %9 : vector<8x128xf32>
    %c0_7 = arith.constant 0 : index
    %c0_8 = arith.constant 0 : index
    %11 = vector.load %arg7[%c0_7, %c0_8] : memref<8x128xf32, #tpu.memory_space<vmem>>, vector<8x128xf32>
    %c0_9 = arith.constant 0 : index
    %c0_10 = arith.constant 0 : index
    %12 = vector.load %arg5[%c0_9, %c0_10] : memref<128x128xf32, #tpu.memory_space<vmem>>, vector<128x128xf32>
    %cst_11 = arith.constant dense<0.000000e+00> : vector<8x128xf32>
    %13 = tpu.matmul %10, %12, %cst_11 {dimension_numbers = #tpu.dot_dimension_numbers<[1], [0], [0], [1], [0, 0, 1, 1], [], []>} : vector<8x128xf32>, vector<128x128xf32>, vector<8x128xf32> -> vector<8x128xf32>
    %14 = arith.addf %11, %13 : vector<8x128xf32>
    %c0_12 = arith.constant 0 : index
    %c0_13 = arith.constant 0 : index
    %15 = vector.load %arg7[%c0_12, %c0_13] : memref<8x128xf32, #tpu.memory_space<vmem>>, vector<8x128xf32>
    tpu.vector_store %arg7[%c0_12, %c0_13], %14 {strides = array<i32>} : memref<8x128xf32, #tpu.memory_space<vmem>>, vector<8x128xf32>,
    %c0_i32_14 = arith.constant 0 : i32
    %16 = arith.cmpi eq, %arg1, %c0_i32_14 : i32
    %17 = arith.extui %16 : i1 to i32
    %c0_i32_15 = arith.constant 0 : i32
    %18 = arith.cmpi ne, %17, %c0_i32_15 : i32
    scf.if %18 {
      %c0_16 = arith.constant 0 : index
      %c0_17 = arith.constant 0 : index
      %19 = vector.load %arg7[%c0_16, %c0_17] : memref<8x128xf32, #tpu.memory_space<vmem>>, vector<8x128xf32>
      %c0_18 = arith.constant 0 : index
      %c0_19 = arith.constant 0 : index
      %20 = vector.load %arg6[%c0_18, %c0_19] : memref<1x128xf32, #tpu.memory_space<vmem>>, vector<1x128xf32>
      %21 = vector.broadcast %20 : vector<1x128xf32> to vector<8x128xf32>
      %22 = arith.addf %19, %21 : vector<8x128xf32>
      %c0_20 = arith.constant 0 : index
      %c0_21 = arith.constant 0 : index
      %23 = vector.load %arg7[%c0_20, %c0_21] : memref<8x128xf32, #tpu.memory_space<vmem>>, vector<8x128xf32>
      tpu.vector_store %arg7[%c0_20, %c0_21], %22 {strides = array<i32>} : memref<8x128xf32, #tpu.memory_space<vmem>>, vector<8x128xf32>,
    } else {
    }
    return
  }
  func.func @transform_0(%arg0: i32, %arg1: i32) -> (i32, i32) {
    %c0_i32 = arith.constant 0 : i32
    %c0_i32_0 = arith.constant 0 : i32
    return %arg0, %c0_i32 : i32, i32
  }
  func.func @transform_1(%arg0: i32, %arg1: i32) -> (i32, i32) {
    %c0_i32 = arith.constant 0 : i32
    %c0_i32_0 = arith.constant 0 : i32
    return %c0_i32, %arg1 : i32, i32
  }
  func.func @transform_2(%arg0: i32, %arg1: i32) -> (i32, i32) {
    %c0_i32 = arith.constant 0 : i32
    %c0_i32_0 = arith.constant 0 : i32
    return %c0_i32, %arg1 : i32, i32
  }
  func.func @transform_3(%arg0: i32, %arg1: i32) -> (i32, i32) {
    %c0_i32 = arith.constant 0 : i32
    %c0_i32_0 = arith.constant 0 : i32
    return %arg1, %c0_i32 : i32, i32
  }
  func.func @transform_4(%arg0: i32, %arg1: i32) -> (i32, i32) {
    %c0_i32 = arith.constant 0 : i32
    %c0_i32_0 = arith.constant 0 : i32
    %c0_i32_1 = arith.constant 0 : i32
    return %c0_i32, %c0_i32_0 : i32, i32
  }
  func.func @transform_5(%arg0: i32, %arg1: i32) -> (i32, i32) {
    %c0_i32 = arith.constant 0 : i32
    %c0_i32_0 = arith.constant 0 : i32
    return %arg0, %c0_i32 : i32, i32
  }
}

</mosaic_0001>

<llo_original>
// kernel: simple_mlp_forward.1
$region0: #{simple_mlp_forward.1}
  #allocation0 [shape = 'u32[]', space=smem, size = 0x4, offset = 0x4, fixed_abs, tag = 'smem constant byte address 0x4 - core index']
  #allocation1 [shape = 'u32[144,128]{1,0:T(1,128)}', space=vmem, size = 0x12000, scoped, tag = 'internal scratch']
  %s0 = inlined_call_operand.vmem [shape: f32[8,128], index: 0, kind: input, shape index: {}]
  %s1 = inlined_call_operand.hbm [shape: f32[128,128], index: 1, kind: input, shape index: {}]
  %s2 = inlined_call_operand.vmem [shape: f32[1,128], index: 2, kind: input, shape index: {}]
  %s3 = inlined_call_operand.hbm [shape: f32[128,128], index: 3, kind: input, shape index: {}]
  %s4 = inlined_call_operand.vmem [shape: f32[1,128], index: 4, kind: input, shape index: {}]
  %s5 = inlined_call_operand.vmem [shape: f32[8,128], index: 5, kind: output, shape index: {}]
  %s6 = sld [smem:[#allocation0]]
  $region46: #{simple_mlp_forward.1} parent=0
    _
  %s8 = ssub.s32 1, %s6
  %s9 = scalar_select 0, %s8, %s6
  $region1: #{simple_mlp_forward.1} parent=0
    #allocation2 [shape = 'u8[65536]{0}', space=vmem, size = 0x10000, scoped, tag = 'input window, operand 1, single buffered']
    #allocation3 [shape = 's32[1]{0}', space=sflag, size = 0x4, scoped, tag = 'scoped memory for simple_mlp_forward.1']
    #allocation4 [shape = 'u8[65536]{0}', space=vmem, size = 0x10000, scoped, tag = 'input window, operand 3, single buffered']
    #allocation5 [shape = 's32[1]{0}', space=sflag, size = 0x4, scoped, tag = 'scoped memory for simple_mlp_forward.1']
    %10 = vsyncpa [#allocation3], 0
    %11 = vsyncpa [#allocation5], 0
    // Predicated region
    $region2: #{simple_mlp_forward.1} parent=1 // pred_check
      _
    $region3: #{simple_mlp_forward.1} parent=1 // pred_check_branch
      %13 = sbr.rel (0) target = $region5
    $region4: #{simple_mlp_forward.1} parent=1 // pred_region
      _
    $region5: #{simple_mlp_forward.1} parent=1 // pred_fallthru
      _
    // Predicated region
    $region6: #{simple_mlp_forward.1} parent=1 // pred_check
      _
    $region7: #{simple_mlp_forward.1} parent=1 // pred_check_branch
      %15 = sbr.rel (0) target = $region9
    $region8: #{simple_mlp_forward.1} parent=1 // pred_region
      %s17 = ssub.s32 2048, 2048
      %18 = vsyncadd [#allocation3], %s17
      %s19 = sshll.u32 [#allocation2], 4
      %s20 = int_to_ptr.vmem [resolvable:$true] %s19
      %25 = dma.hbm_to_vmem [thread:$0]  %s1, 2048, %s20, [#allocation3], 128, 128, 8
    $region9: #{simple_mlp_forward.1} parent=1 // pred_fallthru
      _
    // Predicated region
    $region10: #{simple_mlp_forward.1} parent=1 // pred_check
      _
    $region11: #{simple_mlp_forward.1} parent=1 // pred_check_branch
      %27 = sbr.rel (0) target = $region13
    $region12: #{simple_mlp_forward.1} parent=1 // pred_region
      _
    $region13: #{simple_mlp_forward.1} parent=1 // pred_fallthru
      _
    // Predicated region
    $region14: #{simple_mlp_forward.1} parent=1 // pred_check
      _
    $region15: #{simple_mlp_forward.1} parent=1 // pred_check_branch
      %29 = sbr.rel (0) target = $region17
    $region16: #{simple_mlp_forward.1} parent=1 // pred_region
      %s31 = ssub.s32 2048, 2048
      %32 = vsyncadd [#allocation5], %s31
      %s33 = sshll.u32 [#allocation4], 4
      %s34 = int_to_ptr.vmem [resolvable:$true] %s33
      %39 = dma.hbm_to_vmem [thread:$0]  %s3, 2048, %s34, [#allocation5], 128, 128, 8
    $region17: #{simple_mlp_forward.1} parent=1 // pred_fallthru
      _
    // Predicated region
    $region18: #{simple_mlp_forward.1} parent=1 // pred_check
      _
    $region19: #{simple_mlp_forward.1} parent=1 // pred_check_branch
      %41 = sbr.rel (0) target = $region21
    $region20: #{simple_mlp_forward.1} parent=1 // pred_region
      _
    $region21: #{simple_mlp_forward.1} parent=1 // pred_fallthru
      _
    // Predicated region
    $region22: #{simple_mlp_forward.1} parent=1 // pred_check
      _
    $region23: #{simple_mlp_forward.1} parent=1 // pred_check_branch
      %43 = sbr.rel (0) target = $region25
    $region24: #{simple_mlp_forward.1} parent=1 // pred_region
      %44 = dma.done [#allocation3], 2048
    $region25: #{simple_mlp_forward.1} parent=1 // pred_fallthru
      _
    // Predicated region
    $region26: #{simple_mlp_forward.1} parent=1 // pred_check
      _
    $region27: #{simple_mlp_forward.1} parent=1 // pred_check_branch
      %46 = sbr.rel (0) target = $region29
    $region28: #{simple_mlp_forward.1} parent=1 // pred_region
      %47 = dma.done [#allocation5], 2048
    $region29: #{simple_mlp_forward.1} parent=1 // pred_fallthru
      _
    %p48 = scmp.eq.s32.totalorder 0, 0
    // Predicated region
    $region30: #{simple_mlp_forward.1} parent=1 // pred_check
      %p49 = pneg %p48
    $region31: #{simple_mlp_forward.1} parent=1 // pred_check_branch
      %51 = sbr.rel (%p49) target = $region33
    $region32: #{simple_mlp_forward.1} parent=1 // pred_region
      %52 = vst [vmem:[%s5] sm:$0xff] 0.0
    $region33: #{simple_mlp_forward.1} parent=1 // pred_fallthru
      _
    %v53 = vld [vmem:[%s0] sm:$0xff]
    %v54 = vld [vmem:[#allocation2] sm:$0xff]
    %v55 = vld [vmem:[#allocation2 + $0x8] sm:$0xff]
    %v56 = vld [vmem:[#allocation2 + $0x10] sm:$0xff]
    %v57 = vld [vmem:[#allocation2 + $0x18] sm:$0xff]
    %v58 = vld [vmem:[#allocation2 + $0x20] sm:$0xff]
    %v59 = vld [vmem:[#allocation2 + $0x28] sm:$0xff]
    %v60 = vld [vmem:[#allocation2 + $0x30] sm:$0xff]
    %v61 = vld [vmem:[#allocation2 + $0x38] sm:$0xff]
    %v62 = vld [vmem:[#allocation2 + $0x40] sm:$0xff]
    %v63 = vld [vmem:[#allocation2 + $0x48] sm:$0xff]
    %v64 = vld [vmem:[#allocation2 + $0x50] sm:$0xff]
    %v65 = vld [vmem:[#allocation2 + $0x58] sm:$0xff]
    %v66 = vld [vmem:[#allocation2 + $0x60] sm:$0xff]
    %v67 = vld [vmem:[#allocation2 + $0x68] sm:$0xff]
    %v68 = vld [vmem:[#allocation2 + $0x70] sm:$0xff]
    %v69 = vld [vmem:[#allocation2 + $0x78] sm:$0xff]
    %v70 = vld [vmem:[%s2] sm:$0x1]
    %v72 = vlaneseq
    %v73 = vshrl.u32 %v72, 7
    %v74 = vsub.s32 0, %v73
    %v75 = vrot.slane %v70, %v74
    %77 = vmatprep.subr.mxu0 0.0
    %78 = vmatpush1.msra.mxu0 %v54
    %79 = vmatprep.subr.mxu0 0.0
    %80 = vmatpush1.msra.mxu0 %v55
    %81 = vmatprep.subr.mxu0 0.0
    %82 = vmatpush1.msra.mxu0 %v56
    %83 = vmatprep.subr.mxu0 0.0
    %84 = vmatpush1.msra.mxu0 %v57
    %85 = vmatprep.subr.mxu0 0.0
    %86 = vmatpush1.msra.mxu0 %v58
    %87 = vmatprep.subr.mxu0 0.0
    %88 = vmatpush1.msra.mxu0 %v59
    %89 = vmatprep.subr.mxu0 0.0
    %90 = vmatpush1.msra.mxu0 %v60
    %91 = vmatprep.subr.mxu0 0.0
    %92 = vmatpush1.msra.mxu0 %v61
    %93 = vmatprep.subr.mxu0 0.0
    %94 = vmatpush1.msra.mxu0 %v62
    %95 = vmatprep.subr.mxu0 0.0
    %96 = vmatpush1.msra.mxu0 %v63
    %97 = vmatprep.subr.mxu0 0.0
    %98 = vmatpush1.msra.mxu0 %v64
    %99 = vmatprep.subr.mxu0 0.0
    %100 = vmatpush1.msra.mxu0 %v65
    %101 = vmatprep.subr.mxu0 0.0
    %102 = vmatpush1.msra.mxu0 %v66
    %103 = vmatprep.subr.mxu0 0.0
    %104 = vmatpush1.msra.mxu0 %v67
    %105 = vmatprep.subr.mxu0 0.0
    %106 = vmatpush1.msra.mxu0 %v68
    %107 = vmatprep.subr.mxu0 0.0
    %108 = vmatpush1.msra.mxu0 %v69
    %109 = vmatprep.subr.mxu0 0.0
    %110 = vmatpush1.msra.mxu0 0.0
    %111 = vmatprep.subr.mxu0 0.0
    %112 = vmatpush1.msra.mxu0 0.0
    %113 = vmatprep.subr.mxu0 0.0
    %114 = vmatpush1.msra.mxu0 0.0
    %115 = vmatprep.subr.mxu0 0.0
    %116 = vmatpush1.msra.mxu0 0.0
    %117 = vmatprep.subr.mxu0 0.0
    %118 = vmatpush1.msra.mxu0 0.0
    %119 = vmatprep.subr.mxu0 0.0
    %120 = vmatpush1.msra.mxu0 0.0
    %121 = vmatprep.subr.mxu0 0.0
    %122 = vmatpush1.msra.mxu0 0.0
    %123 = vmatprep.subr.mxu0 0.0
    %124 = vmatpush1.msra.mxu0 0.0
    %125 = vmatprep.subr.mxu0 0.0
    %126 = vmatpush1.msra.mxu0 0.0
    %127 = vmatprep.subr.mxu0 0.0
    %128 = vmatpush1.msra.mxu0 0.0
    %129 = vmatprep.subr.mxu0 0.0
    %130 = vmatpush1.msra.mxu0 0.0
    %131 = vmatprep.subr.mxu0 0.0
    %132 = vmatpush1.msra.mxu0 0.0
    %133 = vmatprep.subr.mxu0 0.0
    %134 = vmatpush1.msra.mxu0 0.0
    %135 = vmatprep.subr.mxu0 0.0
    %136 = vmatpush1.msra.mxu0 0.0
    %137 = vmatprep.subr.mxu0 0.0
    %138 = vmatpush1.msra.mxu0 0.0
    %139 = vmatprep.subr.mxu0 0.0
    %140 = vmatpush1.msra.mxu0 0.0
    %141 = vmatprep.mubr.f32.mxu0 0.0
    %142 = vmatmul.mubr.f32.gmra.mrb[0].mxu0 %v53
    %v143 = vpop.f32.mrb[0].mxu0
    %v144 = vadd.f32 %v75, %v143
    %v145 = vpop.f32.mrb[0].mxu0
    %146 = vdwg.mxu0
    %v147 = vmax.f32 %v144, 0.0
    %v148 = vld [vmem:[%s5] sm:$0xff]
    %v149 = vld [vmem:[#allocation4] sm:$0xff]
    %v150 = vld [vmem:[#allocation4 + $0x8] sm:$0xff]
    %v151 = vld [vmem:[#allocation4 + $0x10] sm:$0xff]
    %v152 = vld [vmem:[#allocation4 + $0x18] sm:$0xff]
    %v153 = vld [vmem:[#allocation4 + $0x20] sm:$0xff]
    %v154 = vld [vmem:[#allocation4 + $0x28] sm:$0xff]
    %v155 = vld [vmem:[#allocation4 + $0x30] sm:$0xff]
    %v156 = vld [vmem:[#allocation4 + $0x38] sm:$0xff]
    %v157 = vld [vmem:[#allocation4 + $0x40] sm:$0xff]
    %v158 = vld [vmem:[#allocation4 + $0x48] sm:$0xff]
    %v159 = vld [vmem:[#allocation4 + $0x50] sm:$0xff]
    %v160 = vld [vmem:[#allocation4 + $0x58] sm:$0xff]
    %v161 = vld [vmem:[#allocation4 + $0x60] sm:$0xff]
    %v162 = vld [vmem:[#allocation4 + $0x68] sm:$0xff]
    %v163 = vld [vmem:[#allocation4 + $0x70] sm:$0xff]
    %v164 = vld [vmem:[#allocation4 + $0x78] sm:$0xff]
    %165 = vmatprep.subr.mxu0 0.0
    %166 = vmatpush1.msra.mxu0 %v149
    %167 = vmatprep.subr.mxu0 0.0
    %168 = vmatpush1.msra.mxu0 %v150
    %169 = vmatprep.subr.mxu0 0.0
    %170 = vmatpush1.msra.mxu0 %v151
    %171 = vmatprep.subr.mxu0 0.0
    %172 = vmatpush1.msra.mxu0 %v152
    %173 = vmatprep.subr.mxu0 0.0
    %174 = vmatpush1.msra.mxu0 %v153
    %175 = vmatprep.subr.mxu0 0.0
    %176 = vmatpush1.msra.mxu0 %v154
    %177 = vmatprep.subr.mxu0 0.0
    %178 = vmatpush1.msra.mxu0 %v155
    %179 = vmatprep.subr.mxu0 0.0
    %180 = vmatpush1.msra.mxu0 %v156
    %181 = vmatprep.subr.mxu0 0.0
    %182 = vmatpush1.msra.mxu0 %v157
    %183 = vmatprep.subr.mxu0 0.0
    %184 = vmatpush1.msra.mxu0 %v158
    %185 = vmatprep.subr.mxu0 0.0
    %186 = vmatpush1.msra.mxu0 %v159
    %187 = vmatprep.subr.mxu0 0.0
    %188 = vmatpush1.msra.mxu0 %v160
    %189 = vmatprep.subr.mxu0 0.0
    %190 = vmatpush1.msra.mxu0 %v161
    %191 = vmatprep.subr.mxu0 0.0
    %192 = vmatpush1.msra.mxu0 %v162
    %193 = vmatprep.subr.mxu0 0.0
    %194 = vmatpush1.msra.mxu0 %v163
    %195 = vmatprep.subr.mxu0 0.0
    %196 = vmatpush1.msra.mxu0 %v164
    %197 = vmatprep.subr.mxu0 0.0
    %198 = vmatpush1.msra.mxu0 0.0
    %199 = vmatprep.subr.mxu0 0.0
    %200 = vmatpush1.msra.mxu0 0.0
    %201 = vmatprep.subr.mxu0 0.0
    %202 = vmatpush1.msra.mxu0 0.0
    %203 = vmatprep.subr.mxu0 0.0
    %204 = vmatpush1.msra.mxu0 0.0
    %205 = vmatprep.subr.mxu0 0.0
    %206 = vmatpush1.msra.mxu0 0.0
    %207 = vmatprep.subr.mxu0 0.0
    %208 = vmatpush1.msra.mxu0 0.0
    %209 = vmatprep.subr.mxu0 0.0
    %210 = vmatpush1.msra.mxu0 0.0
    %211 = vmatprep.subr.mxu0 0.0
    %212 = vmatpush1.msra.mxu0 0.0
    %213 = vmatprep.subr.mxu0 0.0
    %214 = vmatpush1.msra.mxu0 0.0
    %215 = vmatprep.subr.mxu0 0.0
    %216 = vmatpush1.msra.mxu0 0.0
    %217 = vmatprep.subr.mxu0 0.0
    %218 = vmatpush1.msra.mxu0 0.0
    %219 = vmatprep.subr.mxu0 0.0
    %220 = vmatpush1.msra.mxu0 0.0
    %221 = vmatprep.subr.mxu0 0.0
    %222 = vmatpush1.msra.mxu0 0.0
    %223 = vmatprep.subr.mxu0 0.0
    %224 = vmatpush1.msra.mxu0 0.0
    %225 = vmatprep.subr.mxu0 0.0
    %226 = vmatpush1.msra.mxu0 0.0
    %227 = vmatprep.subr.mxu0 0.0
    %228 = vmatpush1.msra.mxu0 0.0
    %229 = vmatprep.mubr.f32.mxu0 0.0
    %230 = vmatmul.mubr.f32.gmra.mrb[0].mxu0 %v147
    %v231 = vpop.f32.mrb[0].mxu0
    %v232 = vadd.f32 0.0, %v231
    %v233 = vpop.f32.mrb[0].mxu0
    %234 = vdwg.mxu0
    %v235 = vadd.f32 %v148, %v232
    %236 = vst [vmem:[%s5] sm:$0xff] %v235
    // Predicated region
    $region34: #{simple_mlp_forward.1} parent=1 // pred_check
      %p237 = pneg %p48
    $region35: #{simple_mlp_forward.1} parent=1 // pred_check_branch
      %239 = sbr.rel (%p237) target = $region37
    $region36: #{simple_mlp_forward.1} parent=1 // pred_region
      %v240 = vld [vmem:[%s5] sm:$0xff]
      %v241 = vld [vmem:[%s4] sm:$0x1]
      %v243 = vlaneseq
      %v244 = vshrl.u32 %v243, 7
      %v245 = vsub.s32 0, %v244
      %v246 = vrot.slane %v241, %v245
      %v248 = vadd.f32 %v240, %v246
      %249 = vst [vmem:[%s5] sm:$0xff] %v248
    $region37: #{simple_mlp_forward.1} parent=1 // pred_fallthru
      _
    // Predicated region
    $region38: #{simple_mlp_forward.1} parent=1 // pred_check
      _
    $region39: #{simple_mlp_forward.1} parent=1 // pred_check_branch
      %251 = sbr.rel (0) target = $region41
    $region40: #{simple_mlp_forward.1} parent=1 // pred_region
      _
    $region41: #{simple_mlp_forward.1} parent=1 // pred_fallthru
      _
    // Predicated region
    $region42: #{simple_mlp_forward.1} parent=1 // pred_check
      _
    $region43: #{simple_mlp_forward.1} parent=1 // pred_check_branch
      %253 = sbr.rel (0) target = $region45
    $region44: #{simple_mlp_forward.1} parent=1 // pred_region
      _
    $region45: #{simple_mlp_forward.1} parent=1 // pred_fallthru
      _
    %254 = vsyncpa [#allocation3], 1
    %255 = vsyncpa [#allocation5], 1

</llo_original>
